<compile_context>
chip_gen: v5e
topology: v5e:2x2
jax: 0.10.0
libtpu: 0.0.40
codegen_flags: <defaults>
</compile_context>

<pallas_src>
import functools

import jax
import jax.numpy as jnp
from jax import lax
from jax.experimental import pallas as pl
from jax.experimental.pallas import tpu as pltpu


# ----------------------------------------------------------------------------
# Kernel 1: SLRS + fused sampling.
#   - two folded (1x1 conv + BN) layers, channels-first (no activation transpose)
#   - +5*noise, /gamma, softmax over N (EUP reciprocal)
#   - off-diagonal cosine-similarity loss per batch
#   - per-row argmax index (for torch.unique replacement)
#   - fused sample matmul: sel @ concat([points, xyz, re_xyzft])
# ----------------------------------------------------------------------------
def _slrs_kernel(feat_t_ref, noise_ref, rhs_ref, w1_ref, b1_ref, w2_ref, b2_ref,
                 samples_ref, loss_ref, idx_ref, *, inv_gamma, hard):
    x_t = feat_t_ref[0]                                                # (Din, N)
    h = jnp.dot(w1_ref[...], x_t, preferred_element_type=jnp.float32) + b1_ref[...]
    z = jnp.dot(w2_ref[...], h, preferred_element_type=jnp.float32) + b2_ref[...]   # (S, N)
    logits = z * inv_gamma + noise_ref[0] * (5.0 * inv_gamma)          # seg=True

    m = jnp.max(logits, axis=-1, keepdims=True)
    e = jnp.exp(logits - m)
    denom = jnp.sum(e, axis=-1, keepdims=True)
    sw = e * pl.reciprocal(denom, approx=True)                         # softmax over N

    # first-max index per selection row -> (S, 1) int32 (replaces XLA argmax on HBM)
    s_n, n_n = logits.shape
    col = lax.broadcasted_iota(jnp.int32, (s_n, n_n), 1)
    is_max = logits == m
    idx = jnp.min(jnp.where(is_max, col, jnp.int32(n_n)), axis=-1, keepdims=True)
    idx_ref[0] = idx

    # cosine loss over off-diagonal pairs of the soft selection rows.
    g = lax.dot_general(sw, sw, (((1,), (1,)), ((), ())),
                        preferred_element_type=jnp.float32)            # (S, S), trans-B matmul
    nrm = jnp.sqrt(jnp.sum(sw * sw, axis=-1, keepdims=True))           # (S, 1)
    nm = jnp.dot(nrm, nrm.T, preferred_element_type=jnp.float32)       # (S, S)
    cosm = g * pl.reciprocal(nm + 1e-10, approx=True)
    ii = lax.broadcasted_iota(jnp.int32, (s_n, s_n), 0)
    jj = lax.broadcasted_iota(jnp.int32, (s_n, s_n), 1)
    nodiag = jnp.where(ii == jj, 0.0, cosm)
    loss_ref[0] = jnp.sqrt(jnp.sum(nodiag * nodiag, axis=(0, 1), keepdims=True))

    # fused sampling: sel is VMEM-resident, never round-trips through HBM.
    sel_used = sw
    if hard:                                                           # straight-through fwd value
        sel_used = jnp.where(col == idx, 1.0, 0.0)
    samples_ref[0] = jnp.dot(sel_used, rhs_ref[0], preferred_element_type=jnp.float32)


def slrs_sample_pallas(feat_t, noise, rhs, w1_t, b1_c, w2_t, b2_c, *, gamma, hard):
    B, Din, N = feat_t.shape
    S = w2_t.shape[0]
    K = rhs.shape[2]
    kernel = functools.partial(_slrs_kernel, inv_gamma=1.0 / float(gamma), hard=bool(hard))
    # NOTE: at production sizes (N~1-4k, S~512) tile S here and raise
    # vmem_limit_bytes; toy shapes fit the default scoped VMEM comfortably.
    samples, loss, idx = pl.pallas_call(
        kernel,
        out_shape=(jax.ShapeDtypeStruct((B, S, K), jnp.float32),
                   jax.ShapeDtypeStruct((B, 1, 1), jnp.float32),
                   jax.ShapeDtypeStruct((B, S, 1), jnp.int32)),
        grid=(B,),
        in_specs=[pl.BlockSpec((1, Din, N), lambda i: (i, 0, 0)),
                  pl.BlockSpec((1, S, N), lambda i: (i, 0, 0)),
                  pl.BlockSpec((1, N, K), lambda i: (i, 0, 0)),
                  pl.BlockSpec((Din, Din), lambda i: (0, 0)),
                  pl.BlockSpec((Din, 1), lambda i: (0, 0)),
                  pl.BlockSpec((S, Din), lambda i: (0, 0)),
                  pl.BlockSpec((S, 1), lambda i: (0, 0))],
        out_specs=(pl.BlockSpec((1, S, K), lambda i: (i, 0, 0)),
                   pl.BlockSpec((1, 1, 1), lambda i: (i, 0, 0)),
                   pl.BlockSpec((1, S, 1), lambda i: (i, 0, 0))),
        compiler_params=pltpu.CompilerParams(dimension_semantics=("parallel",)),
    )(feat_t, noise, rhs, w1_t, b1_c, w2_t, b2_c)
    return samples, loss, idx


# ----------------------------------------------------------------------------
# Kernel 2: edge-feature MLP with on-chip edge_fea construction + max over K.
#   layer1 is linear => h1[s,k] = (sp_cz[s] @ W_row + b1) + (feat[k] @ W_col);
#   leaky_relu(0.2), bf16 matmul for layer2 (f32 accumulate), leaky, max over K.
# ----------------------------------------------------------------------------
def _edge_mlp_kernel(spcz_ref, feat_ref, wrow_ref, wcol_ref, b1_ref, w2_ref, b2_ref, o_ref):
    row = jnp.dot(spcz_ref[0], wrow_ref[...], preferred_element_type=jnp.float32) + b1_ref[...]  # (tS, C1)
    col = jnp.dot(feat_ref[0], wcol_ref[...], preferred_element_type=jnp.float32)                # (N,  C1)
    tS, C1 = row.shape
    Np = col.shape[0]
    h1 = row.reshape(tS, 1, C1) + col.reshape(1, Np, C1)               # (tS, N, C1) built in VMEM
    h1 = jnp.where(h1 > 0, h1, 0.2 * h1)                               # leaky_relu(0.2), f32
    h2 = jnp.dot(h1.astype(jnp.bfloat16).reshape(tS * Np, C1), w2_ref[...],
                 preferred_element_type=jnp.float32) + b2_ref[...]     # bf16 MXU, f32 acc
    h2 = jnp.where(h2 > 0, h2, 0.2 * h2)
    o_ref[0] = jnp.max(h2.reshape(tS, Np, -1), axis=1)                 # max over nsample


def _pick_tile_s(S, cap=128):
    t = min(S, cap)
    while S % t:
        t -= 1
    return t


def edge_mlp_pallas(sp_cz, feat_nl, w_row, w_col, b1, w2_bf, b2):
    B, S, DC = sp_cz.shape
    N = feat_nl.shape[1]
    C1 = w_row.shape[1]
    C2 = w2_bf.shape[1]
    tS = _pick_tile_s(S)
    return pl.pallas_call(
        _edge_mlp_kernel,
        out_shape=jax.ShapeDtypeStruct((B, S, C2), jnp.float32),
        grid=(B, S // tS),
        in_specs=[pl.BlockSpec((1, tS, DC), lambda b, s: (b, s, 0)),
                  pl.BlockSpec((1, N, DC), lambda b, s: (b, 0, 0)),
                  pl.BlockSpec((DC, C1), lambda b, s: (0, 0)),
                  pl.BlockSpec((DC, C1), lambda b, s: (0, 0)),
                  pl.BlockSpec((1, C1), lambda b, s: (0, 0)),
                  pl.BlockSpec((C1, C2), lambda b, s: (0, 0)),
                  pl.BlockSpec((1, C2), lambda b, s: (0, 0))],
        out_specs=pl.BlockSpec((1, tS, C2), lambda b, s: (b, s, 0)),
        compiler_params=pltpu.CompilerParams(
            dimension_semantics=("parallel", "parallel")),
    )(sp_cz, feat_nl, w_row, w_col, b1, w2_bf, b2)


# ----------------------------------------------------------------------------
# Parameter init (deterministic; 1x1 conv + eval-mode BatchNorm folded).
# ----------------------------------------------------------------------------
def _conv_bn_fold(kw, kb, kg, kbeta, cin, cout):
    w = 0.1 * jax.random.normal(kw, (cout, cin), jnp.float32)          # Conv2d weight [out,in,1,1]
    b = 0.1 * jax.random.normal(kb, (cout,), jnp.float32)              # Conv2d bias
    g = 1.0 + 0.1 * jax.random.normal(kg, (cout,), jnp.float32)        # BN weight
    beta = 0.1 * jax.random.normal(kbeta, (cout,), jnp.float32)        # BN bias
    s = g / jnp.sqrt(1.0 + 1e-5)                                       # running_var=1, eps=1e-5
    w_eff = w.T * s[None, :]                                           # (cin, cout)
    b_eff = b * s + beta                                               # running_mean=0
    return w_eff, b_eff.reshape(1, cout)


def init_params(key, C, D, npoint, mlp):
    din = D + C                       # SLRS sampling_channel = (in_channel-6)//2 + 3
    cin = 2 * (D + C)                 # edge-feature channels
    ks = jax.random.split(key, 16)
    p = {}
    p["slrs_w1"], p["slrs_b1"] = _conv_bn_fold(ks[0], ks[1], ks[2], ks[3], din, din)
    p["slrs_w2"], p["slrs_b2"] = _conv_bn_fold(ks[4], ks[5], ks[6], ks[7], din, npoint)
    p["mlp_w1"], p["mlp_b1"] = _conv_bn_fold(ks[8], ks[9], ks[10], ks[11], cin, mlp[0])
    p["mlp_w2"], p["mlp_b2"] = _conv_bn_fold(ks[12], ks[13], ks[14], ks[15], mlp[0], mlp[1])
    return p


# ----------------------------------------------------------------------------
# Forward pass of SetAbstraction_SEG (radius=None, group_all=False, seg=True).
# ----------------------------------------------------------------------------
def set_abstraction_seg_forward(params, re_xyzft, xyz, points, *, npoint, nsample,
                                gamma=1.0, hard=False, noise_key=None):
    B, C, N = xyz.shape
    D = points.shape[1]
    assert nsample == N, "radius=None path implies nsample == N"

    xyz_nl = jnp.transpose(xyz, (0, 2, 1))                             # (B, N, C)
    pts_nl = jnp.transpose(points, (0, 2, 1))                          # (B, N, D)
    feat_t = jnp.concatenate([points, xyz], axis=1)                    # (B, D+C, N) channels-first
    rhs = jnp.concatenate([pts_nl, xyz_nl, re_xyzft], axis=-1)         # (B, N, D+C+F)

    noise = jax.random.normal(noise_key, (B, npoint, N), jnp.float32)  # randn_like (seg=True)

    # tiny weight transposes done in the wrapper so the kernel never transposes activations
    w1_t = params["slrs_w1"].T                                         # (Din, Din)
    b1_c = params["slrs_b1"].T                                         # (Din, 1)
    w2_t = params["slrs_w2"].T                                         # (S, Din)
    b2_c = params["slrs_b2"].T                                         # (S, 1)

    samples, loss_b, argidx = slrs_sample_pallas(
        feat_t, noise, rhs, w1_t, b1_c, w2_t, b2_c, gamma=gamma, hard=hard)
    cos_loss = jnp.mean(loss_b)

    sample_points = samples[:, :, :D]                                  # (B, S, D)
    sample_xyz = samples[:, :, D:D + C]                                # (B, S, C)
    sample_re_xyzft = samples[:, :, D + C:]                            # (B, S, F)
    sample_points_org = sample_points

    # torch.unique(index[0]).shape[0] — only batch 0, from the in-kernel argmax
    idx0 = jnp.sort(argidx[0, :, 0])
    unique_num = 1 + jnp.sum((idx0[1:] != idx0[:-1]).astype(jnp.int32))

    # Edge MLP layer-1 weight split (linear layer): because every selection row sums
    # to 1, sel @ grouped_* equals a broadcast of the ungrouped tensors (radius=None),
    # so edge_fea = [sp, pts-sp, cz, xyz-cz] reduces to a rank-1 row+col decomposition.
    w1 = params["mlp_w1"]                                              # rows: [sp(D), dp(D), cz(C), dx(C)]
    w1_sp, w1_dp = w1[:D], w1[D:2 * D]
    w1_cz, w1_dx = w1[2 * D:2 * D + C], w1[2 * D + C:]
    w_row = jnp.concatenate([w1_sp - w1_dp, w1_cz - w1_dx], axis=0)    # acts on [sample_points, sample_xyz]
    w_col = jnp.concatenate([w1_dp, w1_dx], axis=0)                    # acts on [pts_nl, xyz_nl]

    sp_cz = samples[:, :, :D + C]                                      # (B, S, D+C)
    feat_nl = rhs[:, :, :D + C]                                        # (B, N, D+C)
    w2_bf = params["mlp_w2"].astype(jnp.bfloat16)

    new_points_nl = edge_mlp_pallas(sp_cz, feat_nl, w_row, w_col,
                                    params["mlp_b1"], w2_bf, params["mlp_b2"])  # (B, S, Cout)
    new_points = jnp.transpose(new_points_nl, (0, 2, 1))               # (B, Cout, S)
    new_xyz = jnp.transpose(sample_xyz, (0, 2, 1))                     # (B, C, S)
    return new_xyz, new_points, cos_loss, unique_num, sample_points_org, sample_re_xyzft


if __name__ == "__main__":
    key = jax.random.PRNGKey(0)
    B, C, D, N, F = 2, 3, 5, 16, 6
    npoint, nsample = 4, 16
    mlp = [16, 32]
    # in_channel = 2*(D+C) = 16 -> SLRS sampling_channel = (16-6)//2+3 = 8 = D+C

    k_xyz, k_pts, k_re, k_par, k_noise = jax.random.split(key, 5)
    xyz = jax.random.normal(k_xyz, (B, C, N), jnp.float32)             # [B, C, N]
    points = jax.random.normal(k_pts, (B, D, N), jnp.float32)          # [B, D, N]
    re_xyzft = jax.random.normal(k_re, (B, N, F), jnp.float32)         # [B, N, F]

    params = init_params(k_par, C, D, npoint, mlp)

    outs = set_abstraction_seg_forward(params, re_xyzft, xyz, points,
                                       npoint=npoint, nsample=nsample,
                                       gamma=1.0, hard=False, noise_key=k_noise)
    outs = jax.block_until_ready(outs)
    new_xyz, new_points, cos_loss, unique_num, sample_points_org, sample_re_xyzft = outs
    assert new_xyz.shape == (B, C, npoint)
    assert new_points.shape == (B, mlp[-1], npoint)
    assert sample_points_org.shape == (B, npoint, D)
    assert sample_re_xyzft.shape == (B, npoint, F)
    print("KERNEL_OK")
</pallas_src>

<mosaic_0001>
module attributes {stable_mosaic.version = 11 : i64} {
  func.func @_slrs_kernel(%arg0: i32, %arg1: memref<1x8x16xf32, #tpu.memory_space<vmem>>, %arg2: memref<1x4x16xf32, #tpu.memory_space<vmem>>, %arg3: memref<1x16x14xf32, #tpu.memory_space<vmem>>, %arg4: memref<8x8xf32, #tpu.memory_space<vmem>>, %arg5: memref<8x1xf32, #tpu.memory_space<vmem>>, %arg6: memref<4x8xf32, #tpu.memory_space<vmem>>, %arg7: memref<4x1xf32, #tpu.memory_space<vmem>>, %arg8: memref<1x4x14xf32, #tpu.memory_space<vmem>>, %arg9: memref<1x1x1xf32, #tpu.memory_space<vmem>>, %arg10: memref<1x4x1xi32, #tpu.memory_space<vmem>>) attributes {dimension_semantics = [#tpu.dimension_semantics<parallel>], iteration_bounds = array<i64: 2>, scalar_prefetch = 0 : i64, scratch_operands = 0 : i64, tpu.core_type = #tpu.core_type<tc>, window_params = [{transform_indices = @transform_0, window_bounds = array<i64: 1, 8, 16>}, {transform_indices = @transform_1, window_bounds = array<i64: 1, 4, 16>}, {transform_indices = @transform_2, window_bounds = array<i64: 1, 16, 14>}, {pipeline_mode = #tpu.pipeline_mode<synchronous>, transform_indices = @transform_3, window_bounds = array<i64: 8, 8>}, {pipeline_mode = #tpu.pipeline_mode<synchronous>, transform_indices = @transform_4, window_bounds = array<i64: 8, 1>}, {pipeline_mode = #tpu.pipeline_mode<synchronous>, transform_indices = @transform_5, window_bounds = array<i64: 4, 8>}, {pipeline_mode = #tpu.pipeline_mode<synchronous>, transform_indices = @transform_6, window_bounds = array<i64: 4, 1>}, {transform_indices = @transform_7, window_bounds = array<i64: 1, 4, 14>}, {transform_indices = @transform_8, window_bounds = array<i64: 1, 1, 1>}, {transform_indices = @transform_9, window_bounds = array<i64: 1, 4, 1>}]} {
    %c0 = arith.constant 0 : index
    %c0_0 = arith.constant 0 : index
    %c0_1 = arith.constant 0 : index
    %0 = vector.load %arg1[%c0, %c0_0, %c0_1] : memref<1x8x16xf32, #tpu.memory_space<vmem>>, vector<1x8x16xf32>
    %1 = vector.shape_cast %0 : vector<1x8x16xf32> to vector<8x16xf32>
    %c0_2 = arith.constant 0 : index
    %c0_3 = arith.constant 0 : index
    %2 = vector.load %arg4[%c0_2, %c0_3] : memref<8x8xf32, #tpu.memory_space<vmem>>, vector<8x8xf32>
    %cst = arith.constant dense<0.000000e+00> : vector<8x16xf32>
    %3 = tpu.matmul %2, %1, %cst {dimension_numbers = #tpu.dot_dimension_numbers<[1], [0], [0], [1], [0, 0, 1, 1], [], []>} : vector<8x8xf32>, vector<8x16xf32>, vector<8x16xf32> -> vector<8x16xf32>
    %c0_4 = arith.constant 0 : index
    %c0_5 = arith.constant 0 : index
    %4 = vector.load %arg5[%c0_4, %c0_5] : memref<8x1xf32, #tpu.memory_space<vmem>>, vector<8x1xf32>
    %5 = vector.broadcast %4 : vector<8x1xf32> to vector<8x16xf32>
    %6 = arith.addf %3, %5 : vector<8x16xf32>
    %c0_6 = arith.constant 0 : index
    %c0_7 = arith.constant 0 : index
    %7 = vector.load %arg6[%c0_6, %c0_7] : memref<4x8xf32, #tpu.memory_space<vmem>>, vector<4x8xf32>
    %cst_8 = arith.constant dense<0.000000e+00> : vector<4x16xf32>
    %8 = tpu.matmul %7, %6, %cst_8 {dimension_numbers = #tpu.dot_dimension_numbers<[1], [0], [0], [1], [0, 0, 1, 1], [], []>} : vector<4x8xf32>, vector<8x16xf32>, vector<4x16xf32> -> vector<4x16xf32>
    %c0_9 = arith.constant 0 : index
    %c0_10 = arith.constant 0 : index
    %9 = vector.load %arg7[%c0_9, %c0_10] : memref<4x1xf32, #tpu.memory_space<vmem>>, vector<4x1xf32>
    %10 = vector.broadcast %9 : vector<4x1xf32> to vector<4x16xf32>
    %11 = arith.addf %8, %10 : vector<4x16xf32>
    %cst_11 = arith.constant 1.000000e+00 : f32
    %12 = vector.broadcast %cst_11 : f32 to vector<4x16xf32>
    %13 = arith.mulf %11, %12 : vector<4x16xf32>
    %c0_12 = arith.constant 0 : index
    %c0_13 = arith.constant 0 : index
    %c0_14 = arith.constant 0 : index
    %14 = vector.load %arg2[%c0_12, %c0_13, %c0_14] : memref<1x4x16xf32, #tpu.memory_space<vmem>>, vector<1x4x16xf32>
    %15 = vector.shape_cast %14 : vector<1x4x16xf32> to vector<4x16xf32>
    %cst_15 = arith.constant 5.000000e+00 : f32
    %16 = vector.broadcast %cst_15 : f32 to vector<4x16xf32>
    %17 = arith.mulf %15, %16 : vector<4x16xf32>
    %18 = arith.addf %13, %17 : vector<4x16xf32>
    %cst_16 = arith.constant dense<0xFF800000> : vector<4xf32>
    %19 = vector.multi_reduction <maximumf>, %18, %cst_16 [1] : vector<4x16xf32> to vector<4xf32>
    %20 = vector.shape_cast %19 : vector<4xf32> to vector<4x1xf32>
    %21 = vector.broadcast %20 : vector<4x1xf32> to vector<4x16xf32>
    %22 = arith.subf %18, %21 : vector<4x16xf32>
    %23 = math.exp %22 : vector<4x16xf32>
    %cst_17 = arith.constant dense<0.000000e+00> : vector<4xf32>
    %24 = vector.multi_reduction <add>, %23, %cst_17 [1] : vector<4x16xf32> to vector<4xf32>
    %25 = vector.shape_cast %24 : vector<4xf32> to vector<4x1xf32>
    %26 = tpu.reciprocal %25 {approx = true} : vector<4x1xf32> -> vector<4x1xf32>
    %27 = vector.broadcast %26 : vector<4x1xf32> to vector<4x16xf32>
    %28 = arith.mulf %23, %27 : vector<4x16xf32>
    %29 = tpu.iota {dimensions = array<i32: 1>} : vector<4x16xi32>
    %30 = vector.broadcast %20 : vector<4x1xf32> to vector<4x16xf32>
    %31 = arith.cmpf oeq, %18, %30 : vector<4x16xf32>
    %c16_i32 = arith.constant 16 : i32
    %32 = vector.broadcast %c16_i32 : i32 to vector<4x16xi32>
    %33 = arith.select %31, %29, %32 : vector<4x16xi1>, vector<4x16xi32>
    %cst_18 = arith.constant dense<2147483647> : vector<4xi32>
    %34 = vector.multi_reduction <minsi>, %33, %cst_18 [1] : vector<4x16xi32> to vector<4xi32>
    %35 = vector.shape_cast %34 : vector<4xi32> to vector<4x1xi32>
    %c0_19 = arith.constant 0 : index
    %c0_20 = arith.constant 0 : index
    %c0_21 = arith.constant 0 : index
    %36 = vector.load %arg10[%c0_19, %c0_20, %c0_21] : memref<1x4x1xi32, #tpu.memory_space<vmem>>, vector<1x4x1xi32>
    %37 = vector.shape_cast %36 : vector<1x4x1xi32> to vector<4x1xi32>
    %38 = vector.shape_cast %35 : vector<4x1xi32> to vector<1x4x1xi32>
    tpu.vector_store %arg10[%c0_19, %c0_20, %c0_21], %38 {strides = array<i32>} : memref<1x4x1xi32, #tpu.memory_space<vmem>>, vector<1x4x1xi32>,
    %cst_22 = arith.constant dense<0.000000e+00> : vector<4x4xf32>
    %39 = tpu.matmul %28, %28, %cst_22 {dimension_numbers = #tpu.dot_dimension_numbers<[1], [1], [0], [0], [0, 0, 1, 0], [], []>} : vector<4x16xf32>, vector<4x16xf32>, vector<4x4xf32> -> vector<4x4xf32>
    %40 = arith.mulf %28, %28 : vector<4x16xf32>
    %cst_23 = arith.constant dense<0.000000e+00> : vector<4xf32>
    %41 = vector.multi_reduction <add>, %40, %cst_23 [1] : vector<4x16xf32> to vector<4xf32>
    %42 = vector.shape_cast %41 : vector<4xf32> to vector<4x1xf32>
    %43 = math.sqrt %42 : vector<4x1xf32>
    %44 = tpu.transpose %43, [1, 0] : vector<4x1xf32> -> vector<1x4xf32>
    %cst_24 = arith.constant dense<0.000000e+00> : vector<4x4xf32>
    %45 = tpu.matmul %43, %44, %cst_24 {dimension_numbers = #tpu.dot_dimension_numbers<[1], [0], [0], [1], [0, 0, 1, 1], [], []>} : vector<4x1xf32>, vector<1x4xf32>, vector<4x4xf32> -> vector<4x4xf32>
    %cst_25 = arith.constant 1.000000e-10 : f32
    %46 = vector.broadcast %cst_25 : f32 to vector<4x4xf32>
    %47 = arith.addf %45, %46 : vector<4x4xf32>
    %48 = tpu.reciprocal %47 {approx = true} : vector<4x4xf32> -> vector<4x4xf32>
    %49 = arith.mulf %39, %48 : vector<4x4xf32>
    %50 = tpu.iota {dimensions = array<i32: 0>} : vector<4x4xi32>
    %51 = tpu.iota {dimensions = array<i32: 1>} : vector<4x4xi32>
    %52 = arith.cmpi eq, %50, %51 : vector<4x4xi32>
    %cst_26 = arith.constant 0.000000e+00 : f32
    %53 = vector.broadcast %cst_26 : f32 to vector<4x4xf32>
    %54 = arith.select %52, %53, %49 : vector<4x4xi1>, vector<4x4xf32>
    %55 = arith.mulf %54, %54 : vector<4x4xf32>
    %56 = vector.shape_cast %55 : vector<4x4xf32> to vector<1x4x4xf32>
    %cst_27 = arith.constant dense<0.000000e+00> : vector<1xf32>
    %57 = vector.multi_reduction <add>, %56, %cst_27 [1, 2] : vector<1x4x4xf32> to vector<1xf32>
    %58 = vector.shape_cast %57 : vector<1xf32> to vector<1x1x1xf32>
    %59 = vector.extract %58[0, 0, 0] : f32 from vector<1x1x1xf32>
    %60 = vector.broadcast %59 : f32 to vector<1x1xf32>
    %61 = math.sqrt %60 : vector<1x1xf32>
    %c0_28 = arith.constant 0 : index
    %c0_29 = arith.constant 0 : index
    %c0_30 = arith.constant 0 : index
    %62 = vector.load %arg9[%c0_28, %c0_29, %c0_30] : memref<1x1x1xf32, #tpu.memory_space<vmem>>, vector<1x1x1xf32>
    %63 = vector.shape_cast %62 : vector<1x1x1xf32> to vector<1x1xf32>
    %64 = vector.shape_cast %61 : vector<1x1xf32> to vector<1x1x1xf32>
    tpu.vector_store %arg9[%c0_28, %c0_29, %c0_30], %64 {strides = array<i32>} : memref<1x1x1xf32, #tpu.memory_space<vmem>>, vector<1x1x1xf32>,
    %c0_31 = arith.constant 0 : index
    %c0_32 = arith.constant 0 : index
    %c0_33 = arith.constant 0 : index
    %65 = vector.load %arg3[%c0_31, %c0_32, %c0_33] : memref<1x16x14xf32, #tpu.memory_space<vmem>>, vector<1x16x14xf32>
    %66 = vector.shape_cast %65 : vector<1x16x14xf32> to vector<16x14xf32>
    %cst_34 = arith.constant dense<0.000000e+00> : vector<4x14xf32>
    %67 = tpu.matmul %28, %66, %cst_34 {dimension_numbers = #tpu.dot_dimension_numbers<[1], [0], [0], [1], [0, 0, 1, 1], [], []>} : vector<4x16xf32>, vector<16x14xf32>, vector<4x14xf32> -> vector<4x14xf32>
    %c0_35 = arith.constant 0 : index
    %c0_36 = arith.constant 0 : index
    %c0_37 = arith.constant 0 : index
    %68 = vector.load %arg8[%c0_35, %c0_36, %c0_37] : memref<1x4x14xf32, #tpu.memory_space<vmem>>, vector<1x4x14xf32>
    %69 = vector.shape_cast %68 : vector<1x4x14xf32> to vector<4x14xf32>
    %70 = vector.shape_cast %67 : vector<4x14xf32> to vector<1x4x14xf32>
    tpu.vector_store %arg8[%c0_35, %c0_36, %c0_37], %70 {strides = array<i32>} : memref<1x4x14xf32, #tpu.memory_space<vmem>>, vector<1x4x14xf32>,
    return
  }
  func.func @transform_0(%arg0: i32) -> (i32, i32, i32) {
    %c0_i32 = arith.constant 0 : i32
    %c0_i32_0 = arith.constant 0 : i32
    %c0_i32_1 = arith.constant 0 : i32
    return %arg0, %c0_i32, %c0_i32_0 : i32, i32, i32
  }
  func.func @transform_1(%arg0: i32) -> (i32, i32, i32) {
    %c0_i32 = arith.constant 0 : i32
    %c0_i32_0 = arith.constant 0 : i32
    %c0_i32_1 = arith.constant 0 : i32
    return %arg0, %c0_i32, %c0_i32_0 : i32, i32, i32
  }
  func.func @transform_2(%arg0: i32) -> (i32, i32, i32) {
    %c0_i32 = arith.constant 0 : i32
    %c0_i32_0 = arith.constant 0 : i32
    %c0_i32_1 = arith.constant 0 : i32
    return %arg0, %c0_i32, %c0_i32_0 : i32, i32, i32
  }
  func.func @transform_3(%arg0: i32) -> (i32, i32) {
    %c0_i32 = arith.constant 0 : i32
    %c0_i32_0 = arith.constant 0 : i32
    %c0_i32_1 = arith.constant 0 : i32
    return %c0_i32, %c0_i32_0 : i32, i32
  }
  func.func @transform_4(%arg0: i32) -> (i32, i32) {
    %c0_i32 = arith.constant 0 : i32
    %c0_i32_0 = arith.constant 0 : i32
    %c0_i32_1 = arith.constant 0 : i32
    return %c0_i32, %c0_i32_0 : i32, i32
  }
  func.func @transform_5(%arg0: i32) -> (i32, i32) {
    %c0_i32 = arith.constant 0 : i32
    %c0_i32_0 = arith.constant 0 : i32
    %c0_i32_1 = arith.constant 0 : i32
    return %c0_i32, %c0_i32_0 : i32, i32
  }
  func.func @transform_6(%arg0: i32) -> (i32, i32) {
    %c0_i32 = arith.constant 0 : i32
    %c0_i32_0 = arith.constant 0 : i32
    %c0_i32_1 = arith.constant 0 : i32
    return %c0_i32, %c0_i32_0 : i32, i32
  }
  func.func @transform_7(%arg0: i32) -> (i32, i32, i32) {
    %c0_i32 = arith.constant 0 : i32
    %c0_i32_0 = arith.constant 0 : i32
    %c0_i32_1 = arith.constant 0 : i32
    return %arg0, %c0_i32, %c0_i32_0 : i32, i32, i32
  }
  func.func @transform_8(%arg0: i32) -> (i32, i32, i32) {
    %c0_i32 = arith.constant 0 : i32
    %c0_i32_0 = arith.constant 0 : i32
    %c0_i32_1 = arith.constant 0 : i32
    return %arg0, %c0_i32, %c0_i32_0 : i32, i32, i32
  }
  func.func @transform_9(%arg0: i32) -> (i32, i32, i32) {
    %c0_i32 = arith.constant 0 : i32
    %c0_i32_0 = arith.constant 0 : i32
    %c0_i32_1 = arith.constant 0 : i32
    return %arg0, %c0_i32, %c0_i32_0 : i32, i32, i32
  }
}

</mosaic_0001>

<llo_original>
// kernel: tpu_custom_call.1
$region0: #{tpu_custom_call.1}
  #allocation0 [shape = 'u32[]', space=smem, size = 0x4, offset = 0x4, fixed_abs, tag = 'smem constant byte address 0x4 - core index']
  #allocation1 [shape = 'u32[72,128]{1,0:T(1,128)}', space=vmem, size = 0x9000, scoped, tag = 'internal scratch']
  %s0 = inlined_call_operand.vmem [shape: f32[2,8,16], index: 0, kind: input, shape index: {}]
  %s1 = inlined_call_operand.vmem [shape: f32[2,4,16], index: 1, kind: input, shape index: {}]
  %s2 = inlined_call_operand.vmem [shape: f32[2,16,14], index: 2, kind: input, shape index: {}]
  %s3 = inlined_call_operand.vmem [shape: f32[8,8], index: 3, kind: input, shape index: {}]
  %s4 = inlined_call_operand.vmem [shape: f32[8,1], index: 4, kind: input, shape index: {}]
  %s5 = inlined_call_operand.vmem [shape: f32[4,8], index: 5, kind: input, shape index: {}]
  %s6 = inlined_call_operand.vmem [shape: f32[4,1], index: 6, kind: input, shape index: {}]
  %s7 = inlined_call_operand.hbm [shape: f32[2,4,14], index: 7, kind: output, shape index: {0}]
  %s8 = inlined_call_operand.vmem [shape: f32[2,1,1], index: 8, kind: output, shape index: {1}]
  %s9 = inlined_call_operand.vmem [shape: s32[2,4,1], index: 9, kind: output, shape index: {2}]
  %10 = xla_tuple %s7, %s8, %s9
  %s11 = sld [smem:[#allocation0]]
  $region77: #{tpu_custom_call.1} parent=0
    _
  %s13 = ssub.s32 1, %s11
  %s14 = scalar_select 0, %s13, %s11
  $region1: #{tpu_custom_call.1} parent=0
    #allocation2 [shape = 'u8[4096]{0}', space=vmem, size = 0x1000, scoped, tag = 'output window, operand 0']
    #allocation3 [shape = 's32[2]{0}', space=sflag, size = 0x8, scoped, tag = 'scoped memory for tpu_custom_call.1']
    %15 = vsyncpa [#allocation3], 0
    %s16 = scalar_lea.sflag [#allocation3], 1
    %17 = vsyncpa %s16, 0
    loop: start=0, step=1, limit=4
    $region2: #{tpu_custom_call.1} parent=1 // loop_pre_header
      _
    $region3: #{tpu_custom_call.1} parent=1 // loop_header
      %s19 = sphi 0, %s23
      %p20 = scmp.ge.s32.totalorder %s19, 4
      %s29 = sphi 0, %s31
      %s32 = sphi 0, %s29
      %s33 = sphi 0, %s32
      %s49 = sphi 0, %s33
      %s55 = sphi 0, %s57
      %s58 = sphi 0, %s55
      %s59 = sphi 0, %s58
      %s75 = sphi 0, %s59
      %s81 = sphi 0, %s83
      %s84 = sphi 0, %s81
      %s85 = sphi 0, %s84
      %s101 = sphi 0, %s85
      %s105 = sphi 0, %s105
      %s107 = sphi 0, %s105
      %s108 = sphi 0, %s107
      %s122 = sphi 0, %s108
      %s126 = sphi 0, %s126
      %s128 = sphi 0, %s126
      %s129 = sphi 0, %s128
      %s143 = sphi 0, %s129
      %s147 = sphi 0, %s147
      %s149 = sphi 0, %s147
      %s150 = sphi 0, %s149
      %s164 = sphi 0, %s150
      %s168 = sphi 0, %s168
      %s170 = sphi 0, %s168
      %s171 = sphi 0, %s170
      %s185 = sphi 0, %s171
      %s191 = sphi 0, %s193
      %s194 = sphi 0, %s191
      %s195 = sphi 0, %s194
      %s211 = sphi 0, %s195
      %s217 = sphi 0, %s219
      %s220 = sphi 0, %s217
      %s221 = sphi 0, %s220
      %s237 = sphi 0, %s221
      %s243 = sphi 0, %s245
      %s246 = sphi 0, %s243
      %s247 = sphi 0, %s246
      %s263 = sphi 0, %s247
    $region4: #{tpu_custom_call.1} parent=1 // loop_header_branch
      %22 = sbr.rel (%p20) target = $region8
    $region5: #{tpu_custom_call.1} parent=1 // loop_body
      %s24 = ssub.s32 %s19, 1
      %s25 = ssub.s32 %s19, 2
      %s26 = sadd.s32 %s19, 1
      %s27 = ssub.s32 %s19, %s26
      %p28 = scmp.eq.s32.totalorder %s27, 0
      %s30 = sadd.s32 %s29, 1
      %s31 = scalar_select %p28, %s29, %s30
      %p34 = pneg %p28
      %p35 = scmp.eq.s32.totalorder %s19, 1
      %p36 = por %p34, %p35
      %p37 = scmp.ne.s32.totalorder %s29, %s32
      %p38 = scmp.eq.s32.totalorder %s19, 0
      %p39 = por %p37, %p38
      %p40 = scmp.ne.s32.totalorder %s29, %s32
      %p41 = scmp.eq.s32.totalorder %s24, 1
      %p42 = por %p40, %p41
      %p43 = scmp.ne.s32.totalorder %s32, %s33
      %p44 = scmp.eq.s32.totalorder %s24, 0
      %p45 = por %p43, %p44
      %p46 = scmp.ne.s32.totalorder %s32, %s33
      %p47 = scmp.eq.s32.totalorder %s25, 1
      %p48 = por %p46, %p47
      %p50 = scmp.ne.s32.totalorder %s33, %s49
      %p51 = scmp.eq.s32.totalorder %s25, 0
      %p52 = por %p50, %p51
      %s53 = ssub.s32 %s19, %s26
      %p54 = scmp.eq.s32.totalorder %s53, 0
      %s56 = sadd.s32 %s55, 1
      %s57 = scalar_select %p54, %s55, %s56
      %p60 = pneg %p54
      %p61 = scmp.eq.s32.totalorder %s19, 1
      %p62 = por %p60, %p61
      %p63 = scmp.ne.s32.totalorder %s55, %s58
      %p64 = scmp.eq.s32.totalorder %s19, 0
      %p65 = por %p63, %p64
      %p66 = scmp.ne.s32.totalorder %s55, %s58
      %p67 = scmp.eq.s32.totalorder %s24, 1
      %p68 = por %p66, %p67
      %p69 = scmp.ne.s32.totalorder %s58, %s59
      %p70 = scmp.eq.s32.totalorder %s24, 0
      %p71 = por %p69, %p70
      %p72 = scmp.ne.s32.totalorder %s58, %s59
      %p73 = scmp.eq.s32.totalorder %s25, 1
      %p74 = por %p72, %p73
      %p76 = scmp.ne.s32.totalorder %s59, %s75
      %p77 = scmp.eq.s32.totalorder %s25, 0
      %p78 = por %p76, %p77
      %s79 = ssub.s32 %s19, %s26
      %p80 = scmp.eq.s32.totalorder %s79, 0
      %s82 = sadd.s32 %s81, 1
      %s83 = scalar_select %p80, %s81, %s82
      %p86 = pneg %p80
      %p87 = scmp.eq.s32.totalorder %s19, 1
      %p88 = por %p86, %p87
      %p89 = scmp.ne.s32.totalorder %s81, %s84
      %p90 = scmp.eq.s32.totalorder %s19, 0
      %p91 = por %p89, %p90
      %p92 = scmp.ne.s32.totalorder %s81, %s84
      %p93 = scmp.eq.s32.totalorder %s24, 1
      %p94 = por %p92, %p93
      %p95 = scmp.ne.s32.totalorder %s84, %s85
      %p96 = scmp.eq.s32.totalorder %s24, 0
      %p97 = por %p95, %p96
      %p98 = scmp.ne.s32.totalorder %s84, %s85
      %p99 = scmp.eq.s32.totalorder %s25, 1
      %p100 = por %p98, %p99
      %p102 = scmp.ne.s32.totalorder %s85, %s101
      %p103 = scmp.eq.s32.totalorder %s25, 0
      %p104 = por %p102, %p103
      %s106 = sadd.s32 %s105, 1
      %p109 = scmp.eq.s32.totalorder %s19, 1
      %p110 = scmp.ne.s32.totalorder %s105, %s107
      %p111 = scmp.eq.s32.totalorder %s19, 0
      %p112 = por %p110, %p111
      %p113 = scmp.ne.s32.totalorder %s105, %s107
      %p114 = scmp.eq.s32.totalorder %s24, 1
      %p115 = por %p113, %p114
      %p116 = scmp.ne.s32.totalorder %s107, %s108
      %p117 = scmp.eq.s32.totalorder %s24, 0
      %p118 = por %p116, %p117
      %p119 = scmp.ne.s32.totalorder %s107, %s108
      %p120 = scmp.eq.s32.totalorder %s25, 1
      %p121 = por %p119, %p120
      %p123 = scmp.ne.s32.totalorder %s108, %s122
      %p124 = scmp.eq.s32.totalorder %s25, 0
      %p125 = por %p123, %p124
      %s127 = sadd.s32 %s126, 1
      %p130 = scmp.eq.s32.totalorder %s19, 1
      %p131 = scmp.ne.s32.totalorder %s126, %s128
      %p132 = scmp.eq.s32.totalorder %s19, 0
      %p133 = por %p131, %p132
      %p134 = scmp.ne.s32.totalorder %s126, %s128
      %p135 = scmp.eq.s32.totalorder %s24, 1
      %p136 = por %p134, %p135
      %p137 = scmp.ne.s32.totalorder %s128, %s129
      %p138 = scmp.eq.s32.totalorder %s24, 0
      %p139 = por %p137, %p138
      %p140 = scmp.ne.s32.totalorder %s128, %s129
      %p141 = scmp.eq.s32.totalorder %s25, 1
      %p142 = por %p140, %p141
      %p144 = scmp.ne.s32.totalorder %s129, %s143
      %p145 = scmp.eq.s32.totalorder %s25, 0
      %p146 = por %p144, %p145
      %s148 = sadd.s32 %s147, 1
      %p151 = scmp.eq.s32.totalorder %s19, 1
      %p152 = scmp.ne.s32.totalorder %s147, %s149
      %p153 = scmp.eq.s32.totalorder %s19, 0
      %p154 = por %p152, %p153
      %p155 = scmp.ne.s32.totalorder %s147, %s149
      %p156 = scmp.eq.s32.totalorder %s24, 1
      %p157 = por %p155, %p156
      %p158 = scmp.ne.s32.totalorder %s149, %s150
      %p159 = scmp.eq.s32.totalorder %s24, 0
      %p160 = por %p158, %p159
      %p161 = scmp.ne.s32.totalorder %s149, %s150
      %p162 = scmp.eq.s32.totalorder %s25, 1
      %p163 = por %p161, %p162
      %p165 = scmp.ne.s32.totalorder %s150, %s164
      %p166 = scmp.eq.s32.totalorder %s25, 0
      %p167 = por %p165, %p166
      %s169 = sadd.s32 %s168, 1
      %p172 = scmp.eq.s32.totalorder %s19, 1
      %p173 = scmp.ne.s32.totalorder %s168, %s170
      %p174 = scmp.eq.s32.totalorder %s19, 0
      %p175 = por %p173, %p174
      %p176 = scmp.ne.s32.totalorder %s168, %s170
      %p177 = scmp.eq.s32.totalorder %s24, 1
      %p178 = por %p176, %p177
      %p179 = scmp.ne.s32.totalorder %s170, %s171
      %p180 = scmp.eq.s32.totalorder %s24, 0
      %p181 = por %p179, %p180
      %p182 = scmp.ne.s32.totalorder %s170, %s171
      %p183 = scmp.eq.s32.totalorder %s25, 1
      %p184 = por %p182, %p183
      %p186 = scmp.ne.s32.totalorder %s171, %s185
      %p187 = scmp.eq.s32.totalorder %s25, 0
      %p188 = por %p186, %p187
      %s189 = ssub.s32 %s19, %s26
      %p190 = scmp.eq.s32.totalorder %s189, 0
      %s192 = sadd.s32 %s191, 1
      %s193 = scalar_select %p190, %s191, %s192
      %p196 = pneg %p190
      %p197 = scmp.eq.s32.totalorder %s19, 1
      %p198 = por %p196, %p197
      %p199 = scmp.ne.s32.totalorder %s191, %s194
      %p200 = scmp.eq.s32.totalorder %s19, 0
      %p201 = por %p199, %p200
      %p202 = scmp.ne.s32.totalorder %s191, %s194
      %p203 = scmp.eq.s32.totalorder %s24, 1
      %p204 = por %p202, %p203
      %p205 = scmp.ne.s32.totalorder %s194, %s195
      %p206 = scmp.eq.s32.totalorder %s24, 0
      %p207 = por %p205, %p206
      %p208 = scmp.ne.s32.totalorder %s194, %s195
      %p209 = scmp.eq.s32.totalorder %s25, 1
      %p210 = por %p208, %p209
      %p212 = scmp.ne.s32.totalorder %s195, %s211
      %p213 = scmp.eq.s32.totalorder %s25, 0
      %p214 = por %p212, %p213
      %s215 = ssub.s32 %s19, %s26
      %p216 = scmp.eq.s32.totalorder %s215, 0
      %s218 = sadd.s32 %s217, 1
      %s219 = scalar_select %p216, %s217, %s218
      %p222 = pneg %p216
      %p223 = scmp.eq.s32.totalorder %s19, 1
      %p224 = por %p222, %p223
      %p225 = scmp.ne.s32.totalorder %s217, %s220
      %p226 = scmp.eq.s32.totalorder %s19, 0
      %p227 = por %p225, %p226
      %p228 = scmp.ne.s32.totalorder %s217, %s220
      %p229 = scmp.eq.s32.totalorder %s24, 1
      %p230 = por %p228, %p229
      %p231 = scmp.ne.s32.totalorder %s220, %s221
      %p232 = scmp.eq.s32.totalorder %s24, 0
      %p233 = por %p231, %p232
      %p234 = scmp.ne.s32.totalorder %s220, %s221
      %p235 = scmp.eq.s32.totalorder %s25, 1
      %p236 = por %p234, %p235
      %p238 = scmp.ne.s32.totalorder %s221, %s237
      %p239 = scmp.eq.s32.totalorder %s25, 0
      %p240 = por %p238, %p239
      %s241 = ssub.s32 %s19, %s26
      %p242 = scmp.eq.s32.totalorder %s241, 0
      %s244 = sadd.s32 %s243, 1
      %s245 = scalar_select %p242, %s243, %s244
      %p248 = pneg %p242
      %p249 = scmp.eq.s32.totalorder %s19, 1
      %p250 = por %p248, %p249
      %p251 = scmp.ne.s32.totalorder %s243, %s246
      %p252 = scmp.eq.s32.totalorder %s19, 0
      %p253 = por %p251, %p252
      %p254 = scmp.ne.s32.totalorder %s243, %s246
      %p255 = scmp.eq.s32.totalorder %s24, 1
      %p256 = por %p254, %p255
      %p257 = scmp.ne.s32.totalorder %s246, %s247
      %p258 = scmp.eq.s32.totalorder %s24, 0
      %p259 = por %p257, %p258
      %p260 = scmp.ne.s32.totalorder %s246, %s247
      %p261 = scmp.eq.s32.totalorder %s25, 1
      %p262 = por %p260, %p261
      %p264 = scmp.ne.s32.totalorder %s247, %s263
      %p265 = scmp.eq.s32.totalorder %s25, 0
      %p266 = por %p264, %p265
      %p267 = scmp.le.s32.totalorder 1, %s19
      %p268 = scmp.lt.s32.totalorder %s19, 3
      %p269 = pnand %p267, %p268
      %p270 = pneg %p269
      // Predicated region
      $region9: #{tpu_custom_call.1} parent=5 // pred_check
        _
      $region10: #{tpu_custom_call.1} parent=5 // pred_check_branch
        %272 = sbr.rel (%p269) target = $region12
      $region11: #{tpu_custom_call.1} parent=5 // pred_region
        %s273 = ssub.s32 %s19, 1
        // Predicated region
        $region13: #{tpu_custom_call.1} parent=11 // pred_check
          %p274 = pneg %p118
        $region14: #{tpu_custom_call.1} parent=11 // pred_check_branch
          %276 = sbr.rel (%p274) target = $region16
        $region15: #{tpu_custom_call.1} parent=11 // pred_region
          _
        $region16: #{tpu_custom_call.1} parent=11 // pred_fallthru
          _
        // Predicated region
        $region17: #{tpu_custom_call.1} parent=11 // pred_check
          %p277 = pneg %p139
        $region18: #{tpu_custom_call.1} parent=11 // pred_check_branch
          %279 = sbr.rel (%p277) target = $region20
        $region19: #{tpu_custom_call.1} parent=11 // pred_region
          _
        $region20: #{tpu_custom_call.1} parent=11 // pred_fallthru
          _
        // Predicated region
        $region21: #{tpu_custom_call.1} parent=11 // pred_check
          %p280 = pneg %p160
        $region22: #{tpu_custom_call.1} parent=11 // pred_check_branch
          %282 = sbr.rel (%p280) target = $region24
        $region23: #{tpu_custom_call.1} parent=11 // pred_region
          _
        $region24: #{tpu_custom_call.1} parent=11 // pred_fallthru
          _
        // Predicated region
        $region25: #{tpu_custom_call.1} parent=11 // pred_check
          %p283 = pneg %p181
        $region26: #{tpu_custom_call.1} parent=11 // pred_check_branch
          %285 = sbr.rel (%p283) target = $region28
        $region27: #{tpu_custom_call.1} parent=11 // pred_region
          _
        $region28: #{tpu_custom_call.1} parent=11 // pred_fallthru
          _
      $region12: #{tpu_custom_call.1} parent=5 // pred_fallthru
        _
      %p286 = scmp.lt.s32.totalorder %s19, 2
      // Predicated region
      $region29: #{tpu_custom_call.1} parent=5 // pred_check
        %p287 = pneg %p286
      $region30: #{tpu_custom_call.1} parent=5 // pred_check_branch
        %289 = sbr.rel (%p287) target = $region32
      $region31: #{tpu_custom_call.1} parent=5 // pred_region
        // Predicated region
        $region33: #{tpu_custom_call.1} parent=31 // pred_check
          %p290 = pneg %p39
        $region34: #{tpu_custom_call.1} parent=31 // pred_check_branch
          %292 = sbr.rel (%p290) target = $region36
        $region35: #{tpu_custom_call.1} parent=31 // pred_region
          %p293 = scmp.lt.s32.totalorder %s19, 1
          %s294 = scalar_select %p293, %s19, 1
          %s295 = smul.addr %s294, 8
          %s296 = scalar_lea.vmem %s0, %s295
        $region36: #{tpu_custom_call.1} parent=31 // pred_fallthru
          _
        // Predicated region
        $region37: #{tpu_custom_call.1} parent=31 // pred_check
          %p297 = pneg %p65
        $region38: #{tpu_custom_call.1} parent=31 // pred_check_branch
          %299 = sbr.rel (%p297) target = $region40
        $region39: #{tpu_custom_call.1} parent=31 // pred_region
          %p300 = scmp.lt.s32.totalorder %s19, 1
          %s301 = scalar_select %p300, %s19, 1
          %s302 = smul.addr %s301, 4
          %s303 = scalar_lea.vmem %s1, %s302
        $region40: #{tpu_custom_call.1} parent=31 // pred_fallthru
          _
        // Predicated region
        $region41: #{tpu_custom_call.1} parent=31 // pred_check
          %p304 = pneg %p91
        $region42: #{tpu_custom_call.1} parent=31 // pred_check_branch
          %306 = sbr.rel (%p304) target = $region44
        $region43: #{tpu_custom_call.1} parent=31 // pred_region
          %p307 = scmp.lt.s32.totalorder %s19, 1
          %s308 = scalar_select %p307, %s19, 1
          %s309 = smul.addr %s308, 2
          %s310 = smul.addr %s309, 8
          %s311 = scalar_lea.vmem %s2, %s310
        $region44: #{tpu_custom_call.1} parent=31 // pred_fallthru
          _
      $region32: #{tpu_custom_call.1} parent=5 // pred_fallthru
        _
      %p312 = scmp.le.s32.totalorder 1, %s19
      %p313 = scmp.lt.s32.totalorder %s19, 3
      %p314 = pnand %p312, %p313
      %p315 = pneg %p314
      // Predicated region
      $region45: #{tpu_custom_call.1} parent=5 // pred_check
        _
      $region46: #{tpu_custom_call.1} parent=5 // pred_check_branch
        %317 = sbr.rel (%p314) target = $region48
      $region47: #{tpu_custom_call.1} parent=5 // pred_region
        %s318 = ssub.s32 %s19, 1
        %p319 = scmp.lt.s32.totalorder %s24, 1
        %s320 = scalar_select %p319, %s24, 1
        %s321 = smul.addr %s320, 8
        %s322 = scalar_lea.vmem %s0, %s321
        %p323 = pneg %p45
        %p324 = pneg %p42
        %p325 = scmp.lt.s32.totalorder %s24, 1
        %s326 = scalar_select %p325, %s24, 1
        %s327 = smul.addr %s326, 4
        %s328 = scalar_lea.vmem %s1, %s327
        %p329 = pneg %p71
        %p330 = pneg %p68
        %p331 = scmp.lt.s32.totalorder %s24, 1
        %s332 = scalar_select %p331, %s24, 1
        %s333 = smul.addr %s332, 2
        %s334 = smul.addr %s333, 8
        %s335 = scalar_lea.vmem %s2, %s334
        %p336 = pneg %p97
        %p337 = pneg %p94
        %p338 = pneg %p118
        %p339 = pneg %p115
        %p340 = pneg %p139
        %p341 = pneg %p136
        %p342 = pneg %p160
        %p343 = pneg %p157
        %p344 = pneg %p181
        %p345 = pneg %p178
        %p346 = pneg %p207
        %p347 = pneg %p204
        %s348 = sand.u32 %s194, 1
        %s349 = scalar_lea.sflag [#allocation3], %s348
        %s350 = sand.u32 %s194, 1
        %s351 = smul.addr %s350, 4
        %s352 = scalar_lea.vmem [#allocation2], %s351
        %p353 = pneg %p233
        %p354 = pneg %p230
        %p355 = scmp.lt.s32.totalorder %s24, 1
        %s356 = scalar_select %p355, %s24, 1
        %s357 = scalar_lea.vmem %s8, %s356
        %p358 = pneg %p259
        %p359 = pneg %p256
        %p360 = scmp.lt.s32.totalorder %s24, 1
        %s361 = scalar_select %p360, %s24, 1
        %s362 = smul.addr %s361, 4
        %s363 = scalar_lea.vmem %s9, %s362
        %p364 = scmp.lt.s32.totalorder %s24, 1
        %s365 = scalar_select %p364, %s24, 1
        %s366 = smul.addr %s365, 8
        %s367 = scalar_lea.vmem %s0, %s366
        %p368 = scmp.lt.s32.totalorder %s24, 1
        %s369 = scalar_select %p368, %s24, 1
        %s370 = smul.addr %s369, 4
        %s371 = scalar_lea.vmem %s1, %s370
        %p372 = scmp.lt.s32.totalorder %s24, 1
        %s373 = scalar_select %p372, %s24, 1
        %s374 = smul.addr %s373, 2
        %s375 = smul.addr %s374, 8
        %s376 = scalar_lea.vmem %s2, %s375
        %p377 = scmp.lt.s32.totalorder %s24, 1
        %s378 = scalar_select %p377, %s24, 1
        %s379 = scalar_lea.vmem %s8, %s378
        %p380 = scmp.lt.s32.totalorder %s24, 1
        %s381 = scalar_select %p380, %s24, 1
        %s382 = smul.addr %s381, 4
        %s383 = scalar_lea.vmem %s9, %s382
        %v384 = vld [vmem:[%s367] sm:$0xff]
        %v385 = vld [vmem:[%s3] sm:$0xff]
        %v386 = vld [vmem:[%s4] sm:$0xff]
        %388 = vset.pattern.permute.xlu0 0
        %389 = vperm.xlu0 %388, %v386
        %v390 = vpop.permute.xlu0 %389
        %vm392 = vcmask 64512
        %v394 = vsel %vm392, %v385, 0
        %396 = vmatpush.msra.mxu0 0.0
        %397 = vmatpush.msra.mxu0 0.0
        %398 = vmatpush.msra.mxu0 0.0
        %399 = vmatpush.msra.mxu0 0.0
        %400 = vmatpush.msra.mxu0 0.0
        %401 = vmatpush.msra.mxu0 0.0
        %402 = vmatpush.msra.mxu0 0.0
        %403 = vmatpush.msra.mxu0 0.0
        %404 = vmatpush.msra.mxu0 0.0
        %405 = vmatpush.msra.mxu0 0.0
        %406 = vmatpush.msra.mxu0 0.0
        %407 = vmatpush.msra.mxu0 0.0
        %408 = vmatpush.msra.mxu0 0.0
        %409 = vmatpush.msra.mxu0 0.0
        %410 = vmatpush.msra.mxu0 0.0
        %411 = vmatpush.msra.mxu0 %v384
        %412 = vmatmul.f32.gmra.mxu0 %v394
        %v413 = vpop.f32.mrf.mxu0
        %v414 = vadd.f32 %v390, %v413
        %415 = vdwg.mxu0
        %v416 = vld [vmem:[%s5] sm:$0xf]
        %v417 = vld [vmem:[%s6] sm:$0xf]
        %419 = vset.pattern.permute.xlu0 0
        %420 = vperm.xlu0 %419, %v417
        %v421 = vpop.permute.xlu0 %420
        %v424 = vsel %vm392, %v416, 0
        %426 = vmatpush.msra.mxu0 0.0
        %427 = vmatpush.msra.mxu0 0.0
        %428 = vmatpush.msra.mxu0 0.0
        %429 = vmatpush.msra.mxu0 0.0
        %430 = vmatpush.msra.mxu0 0.0
        %431 = vmatpush.msra.mxu0 0.0
        %432 = vmatpush.msra.mxu0 0.0
        %433 = vmatpush.msra.mxu0 0.0
        %434 = vmatpush.msra.mxu0 0.0
        %435 = vmatpush.msra.mxu0 0.0
        %436 = vmatpush.msra.mxu0 0.0
        %437 = vmatpush.msra.mxu0 0.0
        %438 = vmatpush.msra.mxu0 0.0
        %439 = vmatpush.msra.mxu0 0.0
        %440 = vmatpush.msra.mxu0 0.0
        %441 = vmatpush.msra.mxu0 %v414
        %442 = vmatmul.f32.gmra.mxu0 %v424
        %v443 = vpop.f32.mrf.mxu0
        %v444 = vadd.f32 %v421, %v443
        %445 = vdwg.mxu0
        %v446 = vld [vmem:[%s371] sm:$0xf]
        %v447 = vmul.f32 %v446, 5.0
        %v448 = vadd.f32 %v444, %v447
        %vm449 = vcmask 125952
        %v450 = vsel %vm449, %v448, -inf
        %451 = vmax.xlane.f32.xlu0 %v450
        %v452 = vpop.xlane.xlu0 %451
        %v453 = vsub.f32 %v448, %v452
        %v454 = vmul.f32 %v453, 1.442695
        %v455 = vpow.pop %v454
        %v456 = vsel %vm449, %v455, 0.0
        %457 = vadd.xlane.f32.xlu0 %v456
        %v458 = vpop.xlane.xlu0 %457
        %v459 = vrcp.pop %v458
        %v460 = vmul.f32 %v455, %v459
        %v461 = vlaneseq
        %v462 = vand.u32 %v461, 127
        %vm463 = vcmp.eq.f32.partialorder %v448, %v452
        %v464 = vsel %vm463, %v462, 16
        %v465 = vsel %vm449, %v464, 2147483647
        %v466 = vand.u32 %v465, 65535
        %v467 = vshra.s32 %v465, 16
        %v468 = vcvt.s32.f32 %v466
        %v469 = vcvt.s32.f32 %v467
        %470 = vmin.xlane.f32.xlu0 %v469
        %v471 = vpop.xlane.xlu0 %470
        %vm472 = vcmp.eq.f32.partialorder %v469, %v471
        %v473 = vsel %vm472, %v468, inf
        %474 = vmin.xlane.f32.xlu0 %v473
        %v475 = vpop.xlane.xlu0 %474
        %v476 = vcvt.f32.s32 %v475
        %v477 = vcvt.f32.s32 %v471
        %v478 = vshll.u32 %v477, 16
        %v479 = vadd.s32 %v478, %v476
        %vm480 = vcmask 3072
        %481 = vst.msk [vmem:[%s383] sm:$0xf] %vm480, %v479
        %vm482 = vcmask 130048
        %v484 = vsel %vm482, %v460, 0
        %486 = vmatpush.xpose.msra.mxu0 0.0
        %487 = vmatpush.xpose.msra.mxu0 0.0
        %488 = vmatpush.xpose.msra.mxu0 0.0
        %489 = vmatpush.xpose.msra.mxu0 0.0
        %490 = vmatpush.xpose.msra.mxu0 0.0
        %491 = vmatpush.xpose.msra.mxu0 0.0
        %492 = vmatpush.xpose.msra.mxu0 0.0
        %493 = vmatpush.xpose.msra.mxu0 0.0
        %494 = vmatpush.xpose.msra.mxu0 0.0
        %495 = vmatpush.xpose.msra.mxu0 0.0
        %496 = vmatpush.xpose.msra.mxu0 0.0
        %497 = vmatpush.xpose.msra.mxu0 0.0
        %498 = vmatpush.xpose.msra.mxu0 0.0
        %499 = vmatpush.xpose.msra.mxu0 0.0
        %500 = vmatpush.xpose.msra.mxu0 0.0
        %501 = vmatpush.xpose.msra.mxu0 %v484
        %502 = vmatmul.f32.gmra.mxu0 %v484
        %v503 = vpop.f32.mrf.mxu0
        %v504 = vadd.f32 0.0, %v503
        %505 = vdwg.mxu0
        %v506 = vmul.f32 %v460, %v460
        %v507 = vsel %vm449, %v506, 0.0
        %508 = vadd.xlane.f32.xlu0 %v507
        %v509 = vpop.xlane.xlu0 %508
        %v510 = vrsqrt.pop %v509
        %v511 = vmul.f32 %v510, %v509
        %v512 = vmul.f32 %v511, %v510
        %v513 = vmul.f32 0.5, %v512
        %v514 = vsub.f32 1.5, %v513
        %v515 = vmul.f32 %v510, %v514
        %v516 = vmul.f32 %v509, %v515
        %vm517 = vcmp.eq.f32.partialorder %v509, inf
        %v518 = vsel %vm517, %v509, %v516
        %vm519 = vcmp.eq.f32.partialorder %v509, 0.0
        %v520 = vand.u32 %v509, 2147483648
        %v521 = vsel %vm519, %v520, %v518
        %vm522 = vcmask 7168
        %v524 = vsel %vm522, %v521, 0
        %526 = vmatpush.xpose.msra.mxu0 0.0
        %527 = vmatpush.xpose.msra.mxu0 0.0
        %528 = vmatpush.xpose.msra.mxu0 0.0
        %529 = vmatpush.xpose.msra.mxu0 0.0
        %530 = vmatpush.xpose.msra.mxu0 0.0
        %531 = vmatpush.xpose.msra.mxu0 0.0
        %532 = vmatpush.xpose.msra.mxu0 0.0
        %533 = vmatpush.xpose.msra.mxu0 0.0
        %534 = vmatpush.xpose.msra.mxu0 0.0
        %535 = vmatpush.xpose.msra.mxu0 0.0
        %536 = vmatpush.xpose.msra.mxu0 0.0
        %537 = vmatpush.xpose.msra.mxu0 0.0
        %538 = vmatpush.xpose.msra.mxu0 0.0
        %539 = vmatpush.xpose.msra.mxu0 0.0
        %540 = vmatpush.xpose.msra.mxu0 0.0
        %541 = vmatpush.xpose.msra.mxu0 %v524
        %542 = vmatmul.f32.gmra.mxu0 %v524
        %v543 = vpop.f32.mrf.mxu0
        %v544 = vadd.f32 1e-10, %v543
        %545 = vdwg.mxu0
        %v546 = vrcp.pop %v544
        %v547 = vmul.f32 %v504, %v546
        %v548 = vlaneseq
        %v549 = vshrl.u32 %v548, 7
        %vm550 = vcmp.eq.s32.totalorder %v549, %v462
        %v551 = vsel %vm550, 0.0, %v547
        %v552 = vmul.f32 %v551, %v551
        %vm553 = vcmask 27648
        %v554 = vsel %vm553, %v552, 0.0
        %555 = vadd.xlane.f32.xlu0 %v554
        %v556 = vpop.xlane.xlu0 %555
        %v557 = vrot.slane %v556, 4
        %v558 = vadd.f32 %v556, %v557
        %v559 = vrot.slane %v558, 2
        %v560 = vadd.f32 %v558, %v559
        %v561 = vrot.slane %v560, 1
        %v562 = vadd.f32 %v560, %v561
        %s563 = vtos %v562
        %v564 = vstv %s563
        %v565 = vrsqrt.pop %v564
        %v566 = vmul.f32 %v565, %v564
        %v567 = vmul.f32 %v566, %v565
        %v568 = vmul.f32 0.5, %v567
        %v569 = vsub.f32 1.5, %v568
        %v570 = vmul.f32 %v565, %v569
        %v571 = vmul.f32 %v564, %v570
        %vm572 = vcmp.eq.f32.partialorder %v564, inf
        %v573 = vsel %vm572, %v564, %v571
        %vm574 = vcmp.eq.f32.partialorder %v564, 0.0
        %v575 = vand.u32 %v564, 2147483648
        %v576 = vsel %vm574, %v575, %v573
        %vm577 = vcmask 0
        %578 = vst.msk [vmem:[%s379] sm:$0x1] %vm577, %v576
        %v579 = vld [vmem:[%s376] sm:$0xff]
        %v580 = vld [vmem:[%s376 + $0x8] sm:$0xff]
        %581 = vmatpush.msra.mxu0 0.0
        %582 = vmatpush.msra.mxu0 0.0
        %583 = vmatpush.msra.mxu0 0.0
        %584 = vmatpush.msra.mxu0 0.0
        %585 = vmatpush.msra.mxu0 0.0
        %586 = vmatpush.msra.mxu0 0.0
        %587 = vmatpush.msra.mxu0 0.0
        %588 = vmatpush.msra.mxu0 0.0
        %589 = vmatpush.msra.mxu0 0.0
        %590 = vmatpush.msra.mxu0 0.0
        %591 = vmatpush.msra.mxu0 0.0
        %592 = vmatpush.msra.mxu0 0.0
        %593 = vmatpush.msra.mxu0 0.0
        %594 = vmatpush.msra.mxu0 0.0
        %595 = vmatpush.msra.mxu0 %v580
        %596 = vmatpush.msra.mxu0 %v579
        %597 = vmatmul.f32.gmra.mxu0 %v484
        %v598 = vpop.f32.mrf.mxu0
        %v599 = vadd.f32 0.0, %v598
        %600 = vdwg.mxu0
        %vm601 = vcmask 109568
        %602 = vst.msk [vmem:[%s352] sm:$0xf] %vm601, %v599
        %s603 = sand.u32 %s194, 1
        %s604 = scalar_lea.sflag [#allocation3], %s603
        %s605 = sand.u32 %s194, 1
        %s606 = smul.addr %s605, 4
        %s607 = scalar_lea.vmem [#allocation2], %s606
        %p608 = scmp.lt.s32.totalorder %s24, 1
        %s609 = scalar_select %p608, %s24, 1
        %s610 = scalar_lea.vmem %s8, %s609
        %p611 = scmp.lt.s32.totalorder %s24, 1
        %s612 = scalar_select %p611, %s24, 1
        %s613 = smul.addr %s612, 4
        %s614 = scalar_lea.vmem %s9, %s613
        // Predicated region
        $region49: #{tpu_custom_call.1} parent=47 // pred_check
          %p615 = pneg %p204
        $region50: #{tpu_custom_call.1} parent=47 // pred_check_branch
          %617 = sbr.rel (%p615) target = $region52
        $region51: #{tpu_custom_call.1} parent=47 // pred_region
          %619 = vsyncadd %s604, 0
          %s620 = smul.addr %s24, 4
          %s621 = scalar_lea.hbm %s7, %s620
          %s623 = sshll.u32 %s607, 4
          %s624 = int_to_ptr.vmem [resolvable:$true] %s623
          %s625 = sshll.u32 %s621, 4
          %s626 = int_to_ptr.hbm [resolvable:$true] %s625
          %628 = dma.vmem_to_hbm [thread:$0]  %s624, 64, %s626, %s604
        $region52: #{tpu_custom_call.1} parent=47 // pred_fallthru
          _
        // Predicated region
        $region53: #{tpu_custom_call.1} parent=47 // pred_check
          %p629 = pneg %p230
        $region54: #{tpu_custom_call.1} parent=47 // pred_check_branch
          %631 = sbr.rel (%p629) target = $region56
        $region55: #{tpu_custom_call.1} parent=47 // pred_region
          _
        $region56: #{tpu_custom_call.1} parent=47 // pred_fallthru
          _
        // Predicated region
        $region57: #{tpu_custom_call.1} parent=47 // pred_check
          %p632 = pneg %p256
        $region58: #{tpu_custom_call.1} parent=47 // pred_check_branch
          %634 = sbr.rel (%p632) target = $region60
        $region59: #{tpu_custom_call.1} parent=47 // pred_region
          _
        $region60: #{tpu_custom_call.1} parent=47 // pred_fallthru
          _
      $region48: #{tpu_custom_call.1} parent=5 // pred_fallthru
        _
      %p635 = scmp.le.s32.totalorder 2, %s19
      // Predicated region
      $region61: #{tpu_custom_call.1} parent=5 // pred_check
        %p636 = pneg %p635
      $region62: #{tpu_custom_call.1} parent=5 // pred_check_branch
        %638 = sbr.rel (%p636) target = $region64
      $region63: #{tpu_custom_call.1} parent=5 // pred_region
        %s639 = ssub.s32 %s19, 2
        // Predicated region
        $region65: #{tpu_custom_call.1} parent=63 // pred_check
          %p640 = pneg %p210
        $region66: #{tpu_custom_call.1} parent=63 // pred_check_branch
          %642 = sbr.rel (%p640) target = $region68
        $region67: #{tpu_custom_call.1} parent=63 // pred_region
          %s643 = sand.u32 %s195, 1
          %s644 = scalar_lea.sflag [#allocation3], %s643
          %s645 = sand.u32 %s195, 1
          %s646 = smul.addr %s645, 4
          %s647 = scalar_lea.vmem [#allocation2], %s646
          %649 = dma.done %s644, 64
        $region68: #{tpu_custom_call.1} parent=63 // pred_fallthru
          _
        // Predicated region
        $region69: #{tpu_custom_call.1} parent=63 // pred_check
          %p650 = pneg %p236
        $region70: #{tpu_custom_call.1} parent=63 // pred_check_branch
          %652 = sbr.rel (%p650) target = $region72
        $region71: #{tpu_custom_call.1} parent=63 // pred_region
          %p653 = scmp.lt.s32.totalorder %s25, 1
          %s654 = scalar_select %p653, %s25, 1
          %s655 = scalar_lea.vmem %s8, %s654
        $region72: #{tpu_custom_call.1} parent=63 // pred_fallthru
          _
        // Predicated region
        $region73: #{tpu_custom_call.1} parent=63 // pred_check
          %p656 = pneg %p262
        $region74: #{tpu_custom_call.1} parent=63 // pred_check_branch
          %658 = sbr.rel (%p656) target = $region76
        $region75: #{tpu_custom_call.1} parent=63 // pred_region
          %p659 = scmp.lt.s32.totalorder %s25, 1
          %s660 = scalar_select %p659, %s25, 1
          %s661 = smul.addr %s660, 4
          %s662 = scalar_lea.vmem %s9, %s661
        $region76: #{tpu_custom_call.1} parent=63 // pred_fallthru
          _
      $region64: #{tpu_custom_call.1} parent=5 // pred_fallthru
        _
    $region6: #{tpu_custom_call.1} parent=1 // loop_footer
      %s23 = sadd.s32 1, %s19
    $region7: #{tpu_custom_call.1} parent=1 // loop_footer_branch
      %18 = sbr.rel target = $region3
    $region8: #{tpu_custom_call.1} parent=1 // loop_exit
      _
    %663 = vsyncpa [#allocation3], 1
    %s664 = scalar_lea.sflag [#allocation3], 1
    %665 = vsyncpa %s664, 1

</llo_original>
